<compile_context>
chip_gen: v6e
topology: v6e:2x2x1
jax: 0.10.0
libtpu: 0.0.40
codegen_flags: <defaults>
</compile_context>

<pallas_src>
import jax
import jax.numpy as jnp
from jax.experimental import pallas as pl
from jax.experimental.pallas import tpu as pltpu

EMBED_SIZE = 32      # embed_size
CONV_OUT   = 64      # stand-in for resnet.fc.in_features at these small shapes
CIN        = 3
KH = KW    = 7
STRIDE     = 2
PAD        = 3
BN_EPS     = 1e-5

K_TRUE     = CIN * KH * KW   # 147 — kept unpadded in HBM (full-dim last block dim)
COUT_PAD   = 128             # lane-dense conv output channels (zero-padded from 64)
E_PAD      = 128             # lane-dense embed width (zero-padded from 32)
MAX_TILE_S = 512             # spatial rows per grid step at full scale; amortizes the
                             # ~0.35us/step pipeline overhead and fills the MXU M dim.
                             # Same on v5e/v6e/v7x: double-buffered patches are only
                             # ~2 x 512 x 147 x 2B ~ 300 KiB, far under any VMEM budget.
                             # TODO(synk): at real ResNet Cout=2048, add a Cout grid
                             # axis with 256-wide blocks on v6e/v7x (128 on v5e).
VMEM_LIMIT = 48 * 1024 * 1024


def _round_up(x, m):
    return (x + m - 1) // m * m


def _pick_tile_s(s):
    # Big tiles at real scale; no wasted spatial padding for tiny toy inputs.
    return min(MAX_TILE_S, _round_up(s, 8))


# ------ Pallas kernel 1: conv stem (im2col matmul) + bias + ReLU + fused pool ------
def conv_relu_pool(patches, w_k_cout, bias_row, s_valid, tile_s):
    """patches: (N, S_pad, 147) bf16, w: (147, COUT_PAD) bf16, bias: (1, COUT_PAD) f32.
    Returns pooled mean features (N, COUT_PAD) bf16.  The global average pool is fused:
    the full (N, S, Cout) feature map never touches HBM."""
    n, s_pad, k = patches.shape
    num_s = s_pad // tile_s
    pad_rows = float(s_pad - s_valid)
    inv_s = 1.0 / float(s_valid)

    def kernel(p_ref, w_ref, b_ref, o_ref, acc_ref):
        s = pl.program_id(1)

        @pl.when(s == 0)
        def _():
            acc_ref[...] = jnp.zeros_like(acc_ref)

        y = jnp.dot(p_ref[0], w_ref[...], preferred_element_type=jnp.float32)
        y = jnp.maximum(y + b_ref[...], 0.0)
        acc_ref[...] += jnp.sum(y, axis=0, keepdims=True)

        @pl.when(s == pl.num_programs(1) - 1)
        def _():
            # Zero-padded patch rows each contributed exactly ReLU(bias); subtract
            # their total once here (no per-step iota/compare/select mask), then
            # turn the exact spatial sum into the adaptive-avg-pool mean.
            corr = acc_ref[...] - jnp.float32(pad_rows) * jnp.maximum(b_ref[...], 0.0)
            o_ref[...] = (corr * jnp.float32(inv_s)).astype(o_ref.dtype)[None]

    cost = pl.CostEstimate(
        flops=2 * n * s_pad * k * COUT_PAD,
        transcendentals=0,
        bytes_accessed=patches.size * 2 + w_k_cout.size * 2
                       + bias_row.size * 4 + n * COUT_PAD * 2,
    )

    pooled = pl.pallas_call(
        kernel,
        out_shape=jax.ShapeDtypeStruct((n, 1, COUT_PAD), jnp.bfloat16),
        grid_spec=pltpu.PrefetchScalarGridSpec(
            num_scalar_prefetch=0,
            grid=(n, num_s),
            in_specs=[
                # TODO(synk): if xprof on v5e still shows exposed patch DMA at this
                # tile size, add pipeline_mode=pl.Buffered(3) to this spec.
                pl.BlockSpec((1, tile_s, k), lambda i, s: (i, s, 0)),
                pl.BlockSpec((k, COUT_PAD), lambda i, s: (0, 0)),
                pl.BlockSpec((1, COUT_PAD), lambda i, s: (0, 0)),
            ],
            out_specs=pl.BlockSpec((1, 1, COUT_PAD), lambda i, s: (i, 0, 0)),
            scratch_shapes=[pltpu.VMEM((1, COUT_PAD), jnp.float32)],
        ),
        compiler_params=pltpu.CompilerParams(
            dimension_semantics=("parallel", "arbitrary"),
            vmem_limit_bytes=VMEM_LIMIT),
        cost_estimate=cost,
    )(patches, w_k_cout, bias_row)
    return pooled.reshape(n, COUT_PAD)


# ------ Pallas kernel 2: embed Linear + BatchNorm1d (training-mode stats) ------
def head(pooled_bf16, w_embed_ce, b_embed_row, gamma_row, beta_row):
    """pooled: (N, COUT_PAD) bf16.  Returns (N, E_PAD) f32; padded E lanes stay 0."""
    n = pooled_bf16.shape[0]
    assert n >= 2, \
        "BatchNorm1d training-mode statistics need batch >= 2 (PyTorch errors at N==1)."
    assert n * E_PAD * 4 <= 4 * 1024 * 1024, \
        "head() keeps the whole batch resident; restructure stats as a two-phase grid reduction first."

    def kernel(f_ref, we_ref, be_ref, g_ref, b_ref, o_ref):
        emb = jnp.dot(f_ref[...], we_ref[...],
                      preferred_element_type=jnp.float32) + be_ref[...]
        inv_n = jnp.float32(1.0 / emb.shape[0])
        mu  = jnp.sum(emb, axis=0, keepdims=True) * inv_n
        d   = emb - mu
        var = jnp.sum(d * d, axis=0, keepdims=True) * inv_n   # two-pass, biased (train mode)
        o_ref[...] = d * jax.lax.rsqrt(var + BN_EPS) * g_ref[...] + b_ref[...]

    vspec = pl.BlockSpec(memory_space=pltpu.MemorySpace.VMEM)
    return pl.pallas_call(
        kernel,
        out_shape=jax.ShapeDtypeStruct((n, E_PAD), jnp.float32),
        in_specs=[vspec] * 5,
        out_specs=vspec,
    )(pooled_bf16, w_embed_ce, b_embed_row, gamma_row, beta_row)


# ------------------------------ glue (plain JAX) ------------------------------
def im2col(x_nchw, kh, kw, stride, pad):
    # TODO(synk): at real ResNet input sizes build the patches in-kernel (manual
    # DMA from the padded NCHW image) or replace the stem with
    # lax.conv_general_dilated, to avoid the ~12x HBM read amplification of a
    # wrapper-side im2col; kept here because the backbone is only a stand-in for
    # the frozen pretrained ResNet-152.
    n, c, h, w = x_nchw.shape
    x = jnp.pad(x_nchw, ((0, 0), (0, 0), (pad, pad), (pad, pad)))
    oh = (h + 2 * pad - kh) // stride + 1
    ow = (w + 2 * pad - kw) // stride + 1
    cols = []
    for i in range(kh):
        for j in range(kw):
            cols.append(x[:, :, i:i + stride * oh:stride, j:j + stride * ow:stride])
    p = jnp.stack(cols, axis=2)                 # (N, C, KH*KW, OH, OW)
    p = p.transpose(0, 3, 4, 1, 2)              # (N, OH, OW, C, KH*KW)
    p = p.reshape(n, oh * ow, c * kh * kw)      # channel-major flatten (matches
    return p, oh, ow                            #   w_conv.reshape(COUT, -1) order)


def prepare_params(params):
    """Transpose / zero-pad / cast parameters once.  Padded Cout / E lanes are exactly 0,
    so they contribute nothing downstream and are sliced off at the end."""
    w_conv, b_conv, w_embed, b_embed, gamma, beta = params
    w_k = w_conv.reshape(CONV_OUT, K_TRUE).T                              # (147, 64)
    w_k = jnp.pad(w_k, ((0, 0), (0, COUT_PAD - CONV_OUT))).astype(jnp.bfloat16)
    b_row = jnp.pad(b_conv, (0, COUT_PAD - CONV_OUT)).reshape(1, COUT_PAD).astype(jnp.float32)
    w_e = jnp.pad(w_embed.T, ((0, COUT_PAD - CONV_OUT),
                              (0, E_PAD - EMBED_SIZE))).astype(jnp.bfloat16)
    b_e = jnp.pad(b_embed, (0, E_PAD - EMBED_SIZE)).reshape(1, E_PAD).astype(jnp.float32)
    g   = jnp.pad(gamma,   (0, E_PAD - EMBED_SIZE)).reshape(1, E_PAD).astype(jnp.float32)
    b   = jnp.pad(beta,    (0, E_PAD - EMBED_SIZE)).reshape(1, E_PAD).astype(jnp.float32)
    return w_k, b_row, w_e, b_e, g, b


def encoder_cnn_forward(images, params):
    w_k, b_row, w_e, b_e, g, b = prepare_params(params)

    # backbone stand-in: conv7x7 s2 p3 + ReLU + global avg pool, fused in kernel 1
    patches, oh, ow = im2col(images.astype(jnp.bfloat16), KH, KW, STRIDE, PAD)
    s = oh * ow
    tile_s = _pick_tile_s(s)
    s_pad = _round_up(s, tile_s)
    if s_pad != s:
        patches = jnp.pad(patches, ((0, 0), (0, s_pad - s), (0, 0)))

    pooled = conv_relu_pool(patches, w_k, b_row, s, tile_s)   # (N, COUT_PAD) bf16
    feats = head(pooled, w_e, b_e, g, b)                      # embed Linear + BatchNorm1d
    return feats[:, :EMBED_SIZE]


def encoder_cnn_reference(images, params):
    """Pure-JAX reference mirroring the kernels' bf16-matmul quantization."""
    w_k, b_row, w_e, b_e, g, b = prepare_params(params)
    patches, oh, ow = im2col(images.astype(jnp.bfloat16), KH, KW, STRIDE, PAD)
    conv = jnp.maximum(
        jnp.dot(patches, w_k, preferred_element_type=jnp.float32) + b_row, 0.0)
    pooled = jnp.mean(conv, axis=1).astype(jnp.bfloat16)                # (N, COUT_PAD)
    emb = jnp.dot(pooled, w_e, preferred_element_type=jnp.float32) + b_e
    mu  = jnp.mean(emb, axis=0, keepdims=True)
    var = jnp.mean((emb - mu) ** 2, axis=0, keepdims=True)
    out = (emb - mu) * jax.lax.rsqrt(var + BN_EPS) * g + b
    return out[:, :EMBED_SIZE]


def init_params(key):
    k1, k2, k3, k4 = jax.random.split(key, 4)
    w_conv  = jax.random.normal(k1, (CONV_OUT, CIN, KH, KW), jnp.float32) * 0.05
    b_conv  = jax.random.normal(k4, (CONV_OUT,), jnp.float32) * 0.05   # nonzero: exercises
    w_embed = jax.random.normal(k2, (EMBED_SIZE, CONV_OUT), jnp.float32) * 0.1   # pad correction
    b_embed = jax.random.normal(k3, (EMBED_SIZE,), jnp.float32) * 0.01
    gamma   = jnp.ones((EMBED_SIZE,), jnp.float32)     # BatchNorm1d default affine init
    beta    = jnp.zeros((EMBED_SIZE,), jnp.float32)
    return (w_conv, b_conv, w_embed, b_embed, gamma, beta)


if __name__ == "__main__":
    key = jax.random.PRNGKey(0)
    pkey, xkey = jax.random.split(key)
    params = init_params(pkey)
    # N=4 (even, >=2) keeps both v7x TensorCores busy on the parallel batch axis;
    # 56x56 input -> OH*OW=784 spatial rows -> 2 spatial tiles of 512 (with 240 padded
    # rows), exercising both the multi-tile accumulation and the finalize correction.
    images = jax.random.normal(xkey, (4, CIN, 56, 56), jnp.float32)   # NCHW

    feats = jax.jit(encoder_cnn_forward)(images, params)
    jax.block_until_ready(feats)
    assert feats.shape == (4, EMBED_SIZE) and feats.dtype == jnp.float32

    ref = encoder_cnn_reference(images, params)
    err = float(jnp.max(jnp.abs(feats - ref)))
    assert jnp.allclose(feats, ref, atol=2e-2, rtol=2e-2), f"max abs err {err}"
    print("KERNEL_OK")
</pallas_src>

<mosaic_0001>
module attributes {stable_mosaic.version = 11 : i64} {
  func.func @kernel(%arg0: i32, %arg1: i32, %arg2: memref<1x512x147xbf16, #tpu.memory_space<vmem>>, %arg3: memref<147x128xbf16, #tpu.memory_space<vmem>>, %arg4: memref<1x128xf32, #tpu.memory_space<vmem>>, %arg5: memref<1x1x128xbf16, #tpu.memory_space<vmem>>, %arg6: memref<1x128xf32, #tpu.memory_space<vmem>>) attributes {dimension_semantics = [#tpu.dimension_semantics<parallel>, #tpu.dimension_semantics<arbitrary>], iteration_bounds = array<i64: 4, 2>, scalar_prefetch = 0 : i64, scratch_operands = 1 : i64, tpu.core_type = #tpu.core_type<tc>, window_params = [{transform_indices = @transform_0, window_bounds = array<i64: 1, 512, 147>}, {pipeline_mode = #tpu.pipeline_mode<synchronous>, transform_indices = @transform_1, window_bounds = array<i64: 147, 128>}, {pipeline_mode = #tpu.pipeline_mode<synchronous>, transform_indices = @transform_2, window_bounds = array<i64: 1, 128>}, {transform_indices = @transform_3, window_bounds = array<i64: 1, 1, 128>}]} {
    %c0_i32 = arith.constant 0 : i32
    %0 = arith.cmpi eq, %arg1, %c0_i32 : i32
    %1 = arith.extui %0 : i1 to i32
    %c0_i32_0 = arith.constant 0 : i32
    %2 = arith.cmpi ne, %1, %c0_i32_0 : i32
    scf.if %2 {
      %cst_14 = arith.constant 0.000000e+00 : f32
      %20 = vector.broadcast %cst_14 : f32 to vector<1x128xf32>
      %c0_15 = arith.constant 0 : index
      %c0_16 = arith.constant 0 : index
      %21 = vector.load %arg6[%c0_15, %c0_16] : memref<1x128xf32, #tpu.memory_space<vmem>>, vector<1x128xf32>
      tpu.vector_store %arg6[%c0_15, %c0_16], %20 {strides = array<i32>} : memref<1x128xf32, #tpu.memory_space<vmem>>, vector<1x128xf32>,
    } else {
    }
    %c0 = arith.constant 0 : index
    %c0_1 = arith.constant 0 : index
    %c0_2 = arith.constant 0 : index
    %3 = vector.load %arg2[%c0, %c0_1, %c0_2] : memref<1x512x147xbf16, #tpu.memory_space<vmem>>, vector<1x512x147xbf16>
    %4 = vector.shape_cast %3 : vector<1x512x147xbf16> to vector<512x147xbf16>
    %c0_3 = arith.constant 0 : index
    %c0_4 = arith.constant 0 : index
    %5 = vector.load %arg3[%c0_3, %c0_4] : memref<147x128xbf16, #tpu.memory_space<vmem>>, vector<147x128xbf16>
    %cst = arith.constant dense<0.000000e+00> : vector<512x128xf32>
    %6 = tpu.matmul %4, %5, %cst {dimension_numbers = #tpu.dot_dimension_numbers<[1], [0], [0], [1], [0, 0, 1, 1], [], []>} : vector<512x147xbf16>, vector<147x128xbf16>, vector<512x128xf32> -> vector<512x128xf32>
    %c0_5 = arith.constant 0 : index
    %c0_6 = arith.constant 0 : index
    %7 = vector.load %arg4[%c0_5, %c0_6] : memref<1x128xf32, #tpu.memory_space<vmem>>, vector<1x128xf32>
    %8 = vector.broadcast %7 : vector<1x128xf32> to vector<512x128xf32>
    %9 = arith.addf %6, %8 : vector<512x128xf32>
    %cst_7 = arith.constant 0.000000e+00 : f32
    %10 = vector.broadcast %cst_7 : f32 to vector<512x128xf32>
    %11 = arith.maximumf %9, %10 : vector<512x128xf32>
    %c0_8 = arith.constant 0 : index
    %c0_9 = arith.constant 0 : index
    %12 = vector.load %arg6[%c0_8, %c0_9] : memref<1x128xf32, #tpu.memory_space<vmem>>, vector<1x128xf32>
    %cst_10 = arith.constant dense<0.000000e+00> : vector<128xf32>
    %13 = vector.multi_reduction <add>, %11, %cst_10 [0] : vector<512x128xf32> to vector<128xf32>
    %14 = vector.shape_cast %13 : vector<128xf32> to vector<1x128xf32>
    %15 = arith.addf %12, %14 : vector<1x128xf32>
    %c0_11 = arith.constant 0 : index
    %c0_12 = arith.constant 0 : index
    %16 = vector.load %arg6[%c0_11, %c0_12] : memref<1x128xf32, #tpu.memory_space<vmem>>, vector<1x128xf32>
    tpu.vector_store %arg6[%c0_11, %c0_12], %15 {strides = array<i32>} : memref<1x128xf32, #tpu.memory_space<vmem>>, vector<1x128xf32>,
    %c1_i32 = arith.constant 1 : i32
    %17 = arith.cmpi eq, %arg1, %c1_i32 : i32
    %18 = arith.extui %17 : i1 to i32
    %c0_i32_13 = arith.constant 0 : i32
    %19 = arith.cmpi ne, %18, %c0_i32_13 : i32
    scf.if %19 {
      %c0_14 = arith.constant 0 : index
      %c0_15 = arith.constant 0 : index
      %20 = vector.load %arg6[%c0_14, %c0_15] : memref<1x128xf32, #tpu.memory_space<vmem>>, vector<1x128xf32>
      %c0_16 = arith.constant 0 : index
      %c0_17 = arith.constant 0 : index
      %21 = vector.load %arg4[%c0_16, %c0_17] : memref<1x128xf32, #tpu.memory_space<vmem>>, vector<1x128xf32>
      %cst_18 = arith.constant 0.000000e+00 : f32
      %22 = vector.broadcast %cst_18 : f32 to vector<1x128xf32>
      %23 = arith.maximumf %21, %22 : vector<1x128xf32>
      %cst_19 = arith.constant 2.400000e+02 : f32
      %24 = vector.broadcast %cst_19 : f32 to vector<1x128xf32>
      %25 = arith.mulf %24, %23 : vector<1x128xf32>
      %26 = arith.subf %20, %25 : vector<1x128xf32>
      %cst_20 = arith.constant 0.00127551018 : f32
      %27 = vector.broadcast %cst_20 : f32 to vector<1x128xf32>
      %28 = arith.mulf %26, %27 : vector<1x128xf32>
      %29 = arith.truncf %28 : vector<1x128xf32> to vector<1x128xbf16>
      %30 = vector.shape_cast %29 : vector<1x128xbf16> to vector<1x1x128xbf16>
      %c0_21 = arith.constant 0 : index
      %c0_22 = arith.constant 0 : index
      %c0_23 = arith.constant 0 : index
      %31 = vector.load %arg5[%c0_21, %c0_22, %c0_23] : memref<1x1x128xbf16, #tpu.memory_space<vmem>>, vector<1x1x128xbf16>
      tpu.vector_store %arg5[%c0_21, %c0_22, %c0_23], %30 {strides = array<i32>} : memref<1x1x128xbf16, #tpu.memory_space<vmem>>, vector<1x1x128xbf16>,
    } else {
    }
    return
  }
  func.func @transform_0(%arg0: i32, %arg1: i32) -> (i32, i32, i32) {
    %c0_i32 = arith.constant 0 : i32
    %c0_i32_0 = arith.constant 0 : i32
    return %arg0, %arg1, %c0_i32 : i32, i32, i32
  }
  func.func @transform_1(%arg0: i32, %arg1: i32) -> (i32, i32) {
    %c0_i32 = arith.constant 0 : i32
    %c0_i32_0 = arith.constant 0 : i32
    %c0_i32_1 = arith.constant 0 : i32
    return %c0_i32, %c0_i32_0 : i32, i32
  }
  func.func @transform_2(%arg0: i32, %arg1: i32) -> (i32, i32) {
    %c0_i32 = arith.constant 0 : i32
    %c0_i32_0 = arith.constant 0 : i32
    %c0_i32_1 = arith.constant 0 : i32
    return %c0_i32, %c0_i32_0 : i32, i32
  }
  func.func @transform_3(%arg0: i32, %arg1: i32) -> (i32, i32, i32) {
    %c0_i32 = arith.constant 0 : i32
    %c0_i32_0 = arith.constant 0 : i32
    %c0_i32_1 = arith.constant 0 : i32
    return %arg0, %c0_i32, %c0_i32_0 : i32, i32, i32
  }
}

module attributes {stable_mosaic.version = 11 : i64} {
  func.func @kernel(%arg0: memref<4x128xbf16, #tpu.memory_space<vmem>>, %arg1: memref<128x128xbf16, #tpu.memory_space<vmem>>, %arg2: memref<1x128xf32, #tpu.memory_space<vmem>>, %arg3: memref<1x128xf32, #tpu.memory_space<vmem>>, %arg4: memref<1x128xf32, #tpu.memory_space<vmem>>, %arg5: memref<4x128xf32, #tpu.memory_space<vmem>>) attributes {dimension_semantics = [], scalar_prefetch = 0 : i64, scratch_operands = 0 : i64, tpu.core_type = #tpu.core_type<tc>} {
    %c0 = arith.constant 0 : index
    %c0_0 = arith.constant 0 : index
    %0 = vector.load %arg0[%c0, %c0_0] : memref<4x128xbf16, #tpu.memory_space<vmem>>, vector<4x128xbf16>
    %c0_1 = arith.constant 0 : index
    %c0_2 = arith.constant 0 : index
    %1 = vector.load %arg1[%c0_1, %c0_2] : memref<128x128xbf16, #tpu.memory_space<vmem>>, vector<128x128xbf16>
    %cst = arith.constant dense<0.000000e+00> : vector<4x128xf32>
    %2 = tpu.matmul %0, %1, %cst {dimension_numbers = #tpu.dot_dimension_numbers<[1], [0], [0], [1], [0, 0, 1, 1], [], []>} : vector<4x128xbf16>, vector<128x128xbf16>, vector<4x128xf32> -> vector<4x128xf32>
    %c0_3 = arith.constant 0 : index
    %c0_4 = arith.constant 0 : index
    %3 = vector.load %arg2[%c0_3, %c0_4] : memref<1x128xf32, #tpu.memory_space<vmem>>, vector<1x128xf32>
    %4 = vector.broadcast %3 : vector<1x128xf32> to vector<4x128xf32>
    %5 = arith.addf %2, %4 : vector<4x128xf32>
    %cst_5 = arith.constant dense<0.000000e+00> : vector<128xf32>
    %6 = vector.multi_reduction <add>, %5, %cst_5 [0] : vector<4x128xf32> to vector<128xf32>
    %7 = vector.shape_cast %6 : vector<128xf32> to vector<1x128xf32>
    %cst_6 = arith.constant 2.500000e-01 : f32
    %8 = vector.broadcast %cst_6 : f32 to vector<1x128xf32>
    %9 = arith.mulf %7, %8 : vector<1x128xf32>
    %10 = vector.broadcast %9 : vector<1x128xf32> to vector<4x128xf32>
    %11 = arith.subf %5, %10 : vector<4x128xf32>
    %12 = arith.mulf %11, %11 : vector<4x128xf32>
    %cst_7 = arith.constant dense<0.000000e+00> : vector<128xf32>
    %13 = vector.multi_reduction <add>, %12, %cst_7 [0] : vector<4x128xf32> to vector<128xf32>
    %14 = vector.shape_cast %13 : vector<128xf32> to vector<1x128xf32>
    %cst_8 = arith.constant 2.500000e-01 : f32
    %15 = vector.broadcast %cst_8 : f32 to vector<1x128xf32>
    %16 = arith.mulf %14, %15 : vector<1x128xf32>
    %cst_9 = arith.constant 9.99999974E-6 : f32
    %17 = vector.broadcast %cst_9 : f32 to vector<1x128xf32>
    %18 = arith.addf %16, %17 : vector<1x128xf32>
    %19 = math.rsqrt %18 : vector<1x128xf32>
    %20 = vector.broadcast %19 : vector<1x128xf32> to vector<4x128xf32>
    %21 = arith.mulf %11, %20 : vector<4x128xf32>
    %c0_10 = arith.constant 0 : index
    %c0_11 = arith.constant 0 : index
    %22 = vector.load %arg3[%c0_10, %c0_11] : memref<1x128xf32, #tpu.memory_space<vmem>>, vector<1x128xf32>
    %23 = vector.broadcast %22 : vector<1x128xf32> to vector<4x128xf32>
    %24 = arith.mulf %21, %23 : vector<4x128xf32>
    %c0_12 = arith.constant 0 : index
    %c0_13 = arith.constant 0 : index
    %25 = vector.load %arg4[%c0_12, %c0_13] : memref<1x128xf32, #tpu.memory_space<vmem>>, vector<1x128xf32>
    %26 = vector.broadcast %25 : vector<1x128xf32> to vector<4x128xf32>
    %27 = arith.addf %24, %26 : vector<4x128xf32>
    %c0_14 = arith.constant 0 : index
    %c0_15 = arith.constant 0 : index
    %28 = vector.load %arg5[%c0_14, %c0_15] : memref<4x128xf32, #tpu.memory_space<vmem>>, vector<4x128xf32>
    tpu.vector_store %arg5[%c0_14, %c0_15], %27 {strides = array<i32>} : memref<4x128xf32, #tpu.memory_space<vmem>>, vector<4x128xf32>,
    return
  }
}

</mosaic_0001>

<llo_original>
// kernel: encoder_cnn_forward.2
$region0: #{encoder_cnn_forward.2}
  #allocation0 [shape = 'u32[]', space=smem, size = 0x4, offset = 0x4, fixed_abs, tag = 'smem constant byte address 0x4 - core index']
  #allocation1 [shape = 'u32[144,128]{1,0:T(1,128)}', space=vmem, size = 0x12000, scoped, tag = 'internal scratch']
  #allocation2 [shape = 'f32[1,128]{1,0:T(1,128)}', space=vmem, size = 0x200, scoped, tag = 'scratch operand']
  %s0 = inlined_call_operand.vmem [shape: bf16[4,1024,147], index: 0, kind: input, shape index: {}]
  %s1 = inlined_call_operand.vmem [shape: bf16[147,128], index: 1, kind: input, shape index: {}]
  %s2 = inlined_call_operand.vmem [shape: f32[1,128], index: 2, kind: input, shape index: {}]
  %s3 = inlined_call_operand.vmem [shape: bf16[4,1,128], index: 3, kind: output, shape index: {}]
  %s4 = sld [smem:[#allocation0]]
  $region53: #{encoder_cnn_forward.2} parent=0
    _
  %s6 = ssub.s32 1, %s4
  %s7 = scalar_select 0, %s6, %s4
  loop: start=0, step=1, limit=10
  $region2: #{encoder_cnn_forward.2} parent=0 // loop_pre_header
    _
  $region3: #{encoder_cnn_forward.2} parent=0 // loop_header
    %s9 = sphi 0, %s13
    %p10 = scmp.ge.s32.totalorder %s9, 10
    %s16 = sphi 0, %s28
    %s17 = sphi 0, %s24
    %s18 = sphi 0, %s16
    %s19 = sphi 0, %s17
    %s20 = sphi 0, %s18
    %s21 = sphi 0, %s19
    %s33 = sphi 0, %s35
    %s36 = sphi 0, %s33
    %s37 = sphi 0, %s36
    %s53 = sphi 0, %s37
    %s57 = sphi 0, %s57
    %s59 = sphi 0, %s57
    %s60 = sphi 0, %s59
    %s74 = sphi 0, %s60
    %s78 = sphi 0, %s78
    %s80 = sphi 0, %s78
    %s81 = sphi 0, %s80
    %s95 = sphi 0, %s81
    %s101 = sphi 0, %s103
    %s104 = sphi 0, %s101
    %s105 = sphi 0, %s104
    %s121 = sphi 0, %s105
  $region4: #{encoder_cnn_forward.2} parent=0 // loop_header_branch
    %12 = sbr.rel (%p10) target = $region8
  $region5: #{encoder_cnn_forward.2} parent=0 // loop_body
    %s14 = ssub.s32 %s9, 1
    %s15 = ssub.s32 %s9, 2
    %s22 = sadd.s32 1, %s17
    %p23 = scmp.ge.s32.totalorder %s22, 2
    %s24 = scalar_select %p23, 0, %s22
    %s25 = sadd.s32 1, %s16
    %s26 = scalar_select %p23, %s25, %s16
    %p27 = scmp.ge.s32.totalorder %s26, 4
    %s28 = scalar_select %p27, 0, %s26
    %s29 = ssub.s32 %s16, %s28
    %s30 = ssub.s32 %s17, %s24
    %s31 = sor.u32 %s29, %s30
    %p32 = scmp.eq.s32.totalorder %s31, 0
    %s34 = sadd.s32 %s33, 1
    %s35 = scalar_select %p32, %s33, %s34
    %p38 = pneg %p32
    %p39 = scmp.eq.s32.totalorder %s9, 7
    %p40 = por %p38, %p39
    %p41 = scmp.ne.s32.totalorder %s33, %s36
    %p42 = scmp.eq.s32.totalorder %s9, 0
    %p43 = por %p41, %p42
    %p44 = scmp.ne.s32.totalorder %s33, %s36
    %p45 = scmp.eq.s32.totalorder %s14, 7
    %p46 = por %p44, %p45
    %p47 = scmp.ne.s32.totalorder %s36, %s37
    %p48 = scmp.eq.s32.totalorder %s14, 0
    %p49 = por %p47, %p48
    %p50 = scmp.ne.s32.totalorder %s36, %s37
    %p51 = scmp.eq.s32.totalorder %s15, 7
    %p52 = por %p50, %p51
    %p54 = scmp.ne.s32.totalorder %s37, %s53
    %p55 = scmp.eq.s32.totalorder %s15, 0
    %p56 = por %p54, %p55
    %s58 = sadd.s32 %s57, 1
    %p61 = scmp.eq.s32.totalorder %s9, 7
    %p62 = scmp.ne.s32.totalorder %s57, %s59
    %p63 = scmp.eq.s32.totalorder %s9, 0
    %p64 = por %p62, %p63
    %p65 = scmp.ne.s32.totalorder %s57, %s59
    %p66 = scmp.eq.s32.totalorder %s14, 7
    %p67 = por %p65, %p66
    %p68 = scmp.ne.s32.totalorder %s59, %s60
    %p69 = scmp.eq.s32.totalorder %s14, 0
    %p70 = por %p68, %p69
    %p71 = scmp.ne.s32.totalorder %s59, %s60
    %p72 = scmp.eq.s32.totalorder %s15, 7
    %p73 = por %p71, %p72
    %p75 = scmp.ne.s32.totalorder %s60, %s74
    %p76 = scmp.eq.s32.totalorder %s15, 0
    %p77 = por %p75, %p76
    %s79 = sadd.s32 %s78, 1
    %p82 = scmp.eq.s32.totalorder %s9, 7
    %p83 = scmp.ne.s32.totalorder %s78, %s80
    %p84 = scmp.eq.s32.totalorder %s9, 0
    %p85 = por %p83, %p84
    %p86 = scmp.ne.s32.totalorder %s78, %s80
    %p87 = scmp.eq.s32.totalorder %s14, 7
    %p88 = por %p86, %p87
    %p89 = scmp.ne.s32.totalorder %s80, %s81
    %p90 = scmp.eq.s32.totalorder %s14, 0
    %p91 = por %p89, %p90
    %p92 = scmp.ne.s32.totalorder %s80, %s81
    %p93 = scmp.eq.s32.totalorder %s15, 7
    %p94 = por %p92, %p93
    %p96 = scmp.ne.s32.totalorder %s81, %s95
    %p97 = scmp.eq.s32.totalorder %s15, 0
    %p98 = por %p96, %p97
    %s99 = ssub.s32 %s16, %s28
    %p100 = scmp.eq.s32.totalorder %s99, 0
    %s102 = sadd.s32 %s101, 1
    %s103 = scalar_select %p100, %s101, %s102
    %p106 = pneg %p100
    %p107 = scmp.eq.s32.totalorder %s9, 7
    %p108 = por %p106, %p107
    %p109 = scmp.ne.s32.totalorder %s101, %s104
    %p110 = scmp.eq.s32.totalorder %s9, 0
    %p111 = por %p109, %p110
    %p112 = scmp.ne.s32.totalorder %s101, %s104
    %p113 = scmp.eq.s32.totalorder %s14, 7
    %p114 = por %p112, %p113
    %p115 = scmp.ne.s32.totalorder %s104, %s105
    %p116 = scmp.eq.s32.totalorder %s14, 0
    %p117 = por %p115, %p116
    %p118 = scmp.ne.s32.totalorder %s104, %s105
    %p119 = scmp.eq.s32.totalorder %s15, 7
    %p120 = por %p118, %p119
    %p122 = scmp.ne.s32.totalorder %s105, %s121
    %p123 = scmp.eq.s32.totalorder %s15, 0
    %p124 = por %p122, %p123
    %p125 = scmp.le.s32.totalorder 1, %s9
    %p126 = scmp.lt.s32.totalorder %s9, 9
    %p127 = pnand %p125, %p126
    %p128 = pneg %p127
    // Predicated region
    $region9: #{encoder_cnn_forward.2} parent=5 // pred_check
      _
    $region10: #{encoder_cnn_forward.2} parent=5 // pred_check_branch
      %130 = sbr.rel (%p127) target = $region12
    $region11: #{encoder_cnn_forward.2} parent=5 // pred_region
      %s131 = ssub.s32 %s9, 1
      // Predicated region
      $region13: #{encoder_cnn_forward.2} parent=11 // pred_check
        %p132 = pneg %p70
      $region14: #{encoder_cnn_forward.2} parent=11 // pred_check_branch
        %134 = sbr.rel (%p132) target = $region16
      $region15: #{encoder_cnn_forward.2} parent=11 // pred_region
        _
      $region16: #{encoder_cnn_forward.2} parent=11 // pred_fallthru
        _
      // Predicated region
      $region17: #{encoder_cnn_forward.2} parent=11 // pred_check
        %p135 = pneg %p91
      $region18: #{encoder_cnn_forward.2} parent=11 // pred_check_branch
        %137 = sbr.rel (%p135) target = $region20
      $region19: #{encoder_cnn_forward.2} parent=11 // pred_region
        _
      $region20: #{encoder_cnn_forward.2} parent=11 // pred_fallthru
        _
    $region12: #{encoder_cnn_forward.2} parent=5 // pred_fallthru
      _
    %p138 = scmp.lt.s32.totalorder %s9, 8
    // Predicated region
    $region21: #{encoder_cnn_forward.2} parent=5 // pred_check
      %p139 = pneg %p138
    $region22: #{encoder_cnn_forward.2} parent=5 // pred_check_branch
      %141 = sbr.rel (%p139) target = $region24
    $region23: #{encoder_cnn_forward.2} parent=5 // pred_region
      // Predicated region
      $region25: #{encoder_cnn_forward.2} parent=23 // pred_check
        %p142 = pneg %p43
      $region26: #{encoder_cnn_forward.2} parent=23 // pred_check_branch
        %144 = sbr.rel (%p142) target = $region28
      $region27: #{encoder_cnn_forward.2} parent=23 // pred_region
        %s145 = smul.u32 64, %s17
        %p146 = scmp.lt.s32.totalorder %s16, 3
        %s147 = scalar_select %p146, %s16, 3
        %p148 = scmp.lt.s32.totalorder %s145, 127
        %s149 = scalar_select %p148, %s145, 127
        %s150 = smul.addr %s149, 2
        %s151 = smul.addr %s147, 256
        %s152 = sadd.s32 %s150, %s151
        %s153 = smul.addr %s152, 4
        %s154 = scalar_lea.vmem %s0, %s153
        %s155 = smul.u32 64, %s17
      $region28: #{encoder_cnn_forward.2} parent=23 // pred_fallthru
        _
    $region24: #{encoder_cnn_forward.2} parent=5 // pred_fallthru
      _
    %p156 = scmp.le.s32.totalorder 1, %s9
    %p157 = scmp.lt.s32.totalorder %s9, 9
    %p158 = pnand %p156, %p157
    %p159 = pneg %p158
    // Predicated region
    $region29: #{encoder_cnn_forward.2} parent=5 // pred_check
      _
    $region30: #{encoder_cnn_forward.2} parent=5 // pred_check_branch
      %161 = sbr.rel (%p158) target = $region32
    $region31: #{encoder_cnn_forward.2} parent=5 // pred_region
      %s162 = ssub.s32 %s9, 1
      %s163 = smul.u32 64, %s19
      %p164 = scmp.lt.s32.totalorder %s18, 3
      %s165 = scalar_select %p164, %s18, 3
      %p166 = scmp.lt.s32.totalorder %s163, 127
      %s167 = scalar_select %p166, %s163, 127
      %s168 = smul.addr %s167, 2
      %s169 = smul.addr %s165, 256
      %s170 = sadd.s32 %s168, %s169
      %s171 = smul.addr %s170, 4
      %s172 = scalar_lea.vmem %s0, %s171
      %p173 = pneg %p49
      %p174 = pneg %p46
      %p175 = pneg %p70
      %p176 = pneg %p67
      %p177 = pneg %p91
      %p178 = pneg %p88
      %p179 = pneg %p117
      %p180 = pneg %p114
      %p181 = scmp.lt.s32.totalorder %s18, 3
      %s182 = scalar_select %p181, %s18, 3
      %s183 = scalar_lea.vmem %s3, %s182
      %s184 = smul.u32 64, %s19
      %p185 = scmp.lt.s32.totalorder %s18, 3
      %s186 = scalar_select %p185, %s18, 3
      %p187 = scmp.lt.s32.totalorder %s184, 127
      %s188 = scalar_select %p187, %s184, 127
      %s189 = smul.addr %s188, 2
      %s190 = smul.addr %s186, 256
      %s191 = sadd.s32 %s189, %s190
      %s192 = smul.addr %s191, 4
      %s193 = scalar_lea.vmem %s0, %s192
      %s194 = smul.u32 64, %s19
      %p195 = scmp.lt.s32.totalorder %s18, 3
      %s196 = scalar_select %p195, %s18, 3
      %s197 = scalar_lea.vmem %s3, %s196
      %p199 = scmp.eq.s32.totalorder %s19, 0
      // Predicated region
      $region33: #{encoder_cnn_forward.2} parent=31 // pred_check
        %p200 = pneg %p199
      $region34: #{encoder_cnn_forward.2} parent=31 // pred_check_branch
        %202 = sbr.rel (%p200) target = $region36
      $region35: #{encoder_cnn_forward.2} parent=31 // pred_region
        %203 = vst [vmem:[#allocation2] sm:$0x1] 0.0
      $region36: #{encoder_cnn_forward.2} parent=31 // pred_fallthru
        _
      %v204 = vld [vmem:[%s193] sm:$0xff]
      %v205 = vld [vmem:[%s193 + $0x8] sm:$0xff]
      %v206 = vld [vmem:[%s193 + $0x10] sm:$0xff]
      %v207 = vld [vmem:[%s193 + $0x18] sm:$0xff]
      %v208 = vld [vmem:[%s193 + $0x20] sm:$0xff]
      %v209 = vld [vmem:[%s193 + $0x28] sm:$0xff]
      %v210 = vld [vmem:[%s193 + $0x30] sm:$0xff]
      %v211 = vld [vmem:[%s193 + $0x38] sm:$0xff]
      %v212 = vld [vmem:[%s193 + $0x40] sm:$0xff]
      %v213 = vld [vmem:[%s193 + $0x48] sm:$0xff]
      %v214 = vld [vmem:[%s193 + $0x50] sm:$0xff]
      %v215 = vld [vmem:[%s193 + $0x58] sm:$0xff]
      %v216 = vld [vmem:[%s193 + $0x60] sm:$0xff]
      %v217 = vld [vmem:[%s193 + $0x68] sm:$0xff]
      %v218 = vld [vmem:[%s193 + $0x70] sm:$0xff]
      %v219 = vld [vmem:[%s193 + $0x78] sm:$0xff]
      %v220 = vld [vmem:[%s193 + $0x80] sm:$0xff]
      %v221 = vld [vmem:[%s193 + $0x88] sm:$0xff]
      %v222 = vld [vmem:[%s193 + $0x90] sm:$0xff]
      %v223 = vld [vmem:[%s193 + $0x98] sm:$0xff]
      %v224 = vld [vmem:[%s193 + $0xa0] sm:$0xff]
      %v225 = vld [vmem:[%s193 + $0xa8] sm:$0xff]
      %v226 = vld [vmem:[%s193 + $0xb0] sm:$0xff]
      %v227 = vld [vmem:[%s193 + $0xb8] sm:$0xff]
      %v228 = vld [vmem:[%s193 + $0xc0] sm:$0xff]
      %v229 = vld [vmem:[%s193 + $0xc8] sm:$0xff]
      %v230 = vld [vmem:[%s193 + $0xd0] sm:$0xff]
      %v231 = vld [vmem:[%s193 + $0xd8] sm:$0xff]
      %v232 = vld [vmem:[%s193 + $0xe0] sm:$0xff]
      %v233 = vld [vmem:[%s193 + $0xe8] sm:$0xff]
      %v234 = vld [vmem:[%s193 + $0xf0] sm:$0xff]
      %v235 = vld [vmem:[%s193 + $0xf8] sm:$0xff]
      %v236 = vld [vmem:[%s193 + $0x100] sm:$0xff]
      %v237 = vld [vmem:[%s193 + $0x108] sm:$0xff]
      %v238 = vld [vmem:[%s193 + $0x110] sm:$0xff]
      %v239 = vld [vmem:[%s193 + $0x118] sm:$0xff]
      %v240 = vld [vmem:[%s193 + $0x120] sm:$0xff]
      %v241 = vld [vmem:[%s193 + $0x128] sm:$0xff]
      %v242 = vld [vmem:[%s193 + $0x130] sm:$0xff]
      %v243 = vld [vmem:[%s193 + $0x138] sm:$0xff]
      %v244 = vld [vmem:[%s193 + $0x140] sm:$0xff]
      %v245 = vld [vmem:[%s193 + $0x148] sm:$0xff]
      %v246 = vld [vmem:[%s193 + $0x150] sm:$0xff]
      %v247 = vld [vmem:[%s193 + $0x158] sm:$0xff]
      %v248 = vld [vmem:[%s193 + $0x160] sm:$0xff]
      %v249 = vld [vmem:[%s193 + $0x168] sm:$0xff]
      %v250 = vld [vmem:[%s193 + $0x170] sm:$0xff]
      %v251 = vld [vmem:[%s193 + $0x178] sm:$0xff]
      %v252 = vld [vmem:[%s193 + $0x180] sm:$0xff]
      %v253 = vld [vmem:[%s193 + $0x188] sm:$0xff]
      %v254 = vld [vmem:[%s193 + $0x190] sm:$0xff]
      %v255 = vld [vmem:[%s193 + $0x198] sm:$0xff]
      %v256 = vld [vmem:[%s193 + $0x1a0] sm:$0xff]
      %v257 = vld [vmem:[%s193 + $0x1a8] sm:$0xff]
      %v258 = vld [vmem:[%s193 + $0x1b0] sm:$0xff]
      %v259 = vld [vmem:[%s193 + $0x1b8] sm:$0xff]
      %v260 = vld [vmem:[%s193 + $0x1c0] sm:$0xff]
      %v261 = vld [vmem:[%s193 + $0x1c8] sm:$0xff]
      %v262 = vld [vmem:[%s193 + $0x1d0] sm:$0xff]
      %v263 = vld [vmem:[%s193 + $0x1d8] sm:$0xff]
      %v264 = vld [vmem:[%s193 + $0x1e0] sm:$0xff]
      %v265 = vld [vmem:[%s193 + $0x1e8] sm:$0xff]
      %v266 = vld [vmem:[%s193 + $0x1f0] sm:$0xff]
      %v267 = vld [vmem:[%s193 + $0x1f8] sm:$0xff]
      %v268 = vld [vmem:[%s1] sm:$0xf]
      %v269 = vld [vmem:[%s1 + $0x4] sm:$0xf]
      %v270 = vld [vmem:[%s1 + $0x8] sm:$0xf]
      %v271 = vld [vmem:[%s1 + $0xc] sm:$0xf]
      %v272 = vld [vmem:[%s1 + $0x10] sm:$0xf]
      %v273 = vld [vmem:[%s1 + $0x14] sm:$0xf]
      %v274 = vld [vmem:[%s1 + $0x18] sm:$0xf]
      %v275 = vld [vmem:[%s1 + $0x1c] sm:$0xf]
      %v276 = vld [vmem:[%s1 + $0x20] sm:$0xf]
      %v277 = vld [vmem:[%s1 + $0x24] sm:$0xf]
      %v278 = vld [vmem:[%s1 + $0x28] sm:$0xf]
      %v279 = vld [vmem:[%s1 + $0x2c] sm:$0xf]
      %v280 = vld [vmem:[%s1 + $0x30] sm:$0xf]
      %v281 = vld [vmem:[%s1 + $0x34] sm:$0xf]
      %v282 = vld [vmem:[%s1 + $0x38] sm:$0xf]
      %v283 = vld [vmem:[%s1 + $0x3c] sm:$0xf]
      %v284 = vld [vmem:[%s1 + $0x40] sm:$0xf]
      %v285 = vld [vmem:[%s1 + $0x44] sm:$0xf]
      %v286 = vld [vmem:[%s1 + $0x48] sm:$0x3]
      %v287 = vld [vmem:[%s2] sm:$0x1]
      %v289 = vlaneseq
      %v290 = vshrl.u32 %v289, 7
      %v291 = vsub.s32 0, %v290
      %v292 = vrot.slane %v287, %v291
      %v358 = vunpack.c.l.b16 %v204
      %v359 = vunpack.c.h.b16 %v204
      %v360 = vunpack.c.l.b16 %v205
      %v361 = vunpack.c.h.b16 %v205
      %v362 = vunpack.c.l.b16 %v206
      %v363 = vunpack.c.h.b16 %v206
      %v364 = vunpack.c.l.b16 %v207
      %v365 = vunpack.c.h.b16 %v207
      %v366 = vunpack.c.l.b16 %v208
      %v367 = vunpack.c.h.b16 %v208
      %v368 = vunpack.c.l.b16 %v209
      %v369 = vunpack.c.h.b16 %v209
      %v370 = vunpack.c.l.b16 %v210
      %v371 = vunpack.c.h.b16 %v210
      %v372 = vunpack.c.l.b16 %v211
      %v373 = vunpack.c.h.b16 %v211
      %v374 = vunpack.c.l.b16 %v212
      %v375 = vunpack.c.h.b16 %v212
      %v376 = vunpack.c.l.b16 %v213
      %v377 = vunpack.c.h.b16 %v213
      %v378 = vunpack.c.l.b16 %v214
      %v379 = vunpack.c.h.b16 %v214
      %v380 = vunpack.c.l.b16 %v215
      %v381 = vunpack.c.h.b16 %v215
      %v382 = vunpack.c.l.b16 %v216
      %v383 = vunpack.c.h.b16 %v216
      %v384 = vunpack.c.l.b16 %v217
      %v385 = vunpack.c.h.b16 %v217
      %v386 = vunpack.c.l.b16 %v218
      %v387 = vunpack.c.h.b16 %v218
      %v388 = vunpack.c.l.b16 %v219
      %v389 = vunpack.c.h.b16 %v219
      %v390 = vunpack.c.l.b16 %v220
      %v391 = vunpack.c.h.b16 %v220
      %v392 = vunpack.c.l.b16 %v221
      %v393 = vunpack.c.h.b16 %v221
      %v394 = vunpack.c.l.b16 %v222
      %v395 = vunpack.c.h.b16 %v222
      %v396 = vunpack.c.l.b16 %v223
      %v397 = vunpack.c.h.b16 %v223
      %v398 = vunpack.c.l.b16 %v224
      %v399 = vunpack.c.h.b16 %v224
      %v400 = vunpack.c.l.b16 %v225
      %v401 = vunpack.c.h.b16 %v225
      %v402 = vunpack.c.l.b16 %v226
      %v403 = vunpack.c.h.b16 %v226
      %v404 = vunpack.c.l.b16 %v227
      %v405 = vunpack.c.h.b16 %v227
      %v406 = vunpack.c.l.b16 %v228
      %v407 = vunpack.c.h.b16 %v228
      %v408 = vunpack.c.l.b16 %v229
      %v409 = vunpack.c.h.b16 %v229
      %v410 = vunpack.c.l.b16 %v230
      %v411 = vunpack.c.h.b16 %v230
      %v412 = vunpack.c.l.b16 %v231
      %v413 = vunpack.c.h.b16 %v231
      %v414 = vunpack.c.l.b16 %v232
      %v415 = vunpack.c.h.b16 %v232
      %v416 = vunpack.c.l.b16 %v233
      %v417 = vunpack.c.h.b16 %v233
      %v418 = vunpack.c.l.b16 %v234
      %v419 = vunpack.c.h.b16 %v234
      %v420 = vunpack.c.l.b16 %v235
      %v421 = vunpack.c.h.b16 %v235
      %v422 = vunpack.c.l.b16 %v236
      %v423 = vunpack.c.h.b16 %v236
      %v424 = vunpack.c.l.b16 %v237
      %v425 = vunpack.c.h.b16 %v237
      %v426 = vunpack.c.l.b16 %v238
      %v427 = vunpack.c.h.b16 %v238
      %v428 = vunpack.c.l.b16 %v239
      %v429 = vunpack.c.h.b16 %v239
      %v430 = vunpack.c.l.b16 %v240
      %v431 = vunpack.c.h.b16 %v240
      %v432 = vunpack.c.l.b16 %v241
      %v433 = vunpack.c.h.b16 %v241
      %v434 = vunpack.c.l.b16 %v242
      %v435 = vunpack.c.h.b16 %v242
      %v436 = vunpack.c.l.b16 %v243
      %v437 = vunpack.c.h.b16 %v243
      %v438 = vunpack.c.l.b16 %v244
      %v439 = vunpack.c.h.b16 %v244
      %v440 = vunpack.c.l.b16 %v245
      %v441 = vunpack.c.h.b16 %v245
      %v442 = vunpack.c.l.b16 %v246
      %v443 = vunpack.c.h.b16 %v246
      %v444 = vunpack.c.l.b16 %v247
      %v445 = vunpack.c.h.b16 %v247
      %v446 = vunpack.c.l.b16 %v248
      %v447 = vunpack.c.h.b16 %v248
      %v448 = vunpack.c.l.b16 %v249
      %v449 = vunpack.c.h.b16 %v249
      %v450 = vunpack.c.l.b16 %v250
      %v451 = vunpack.c.h.b16 %v250
      %v452 = vunpack.c.l.b16 %v251
      %v453 = vunpack.c.h.b16 %v251
      %v454 = vunpack.c.l.b16 %v252
      %v455 = vunpack.c.h.b16 %v252
      %v456 = vunpack.c.l.b16 %v253
      %v457 = vunpack.c.h.b16 %v253
      %v458 = vunpack.c.l.b16 %v254
      %v459 = vunpack.c.h.b16 %v254
      %v460 = vunpack.c.l.b16 %v255
      %v461 = vunpack.c.h.b16 %v255
      %v462 = vunpack.c.l.b16 %v256
      %v463 = vunpack.c.h.b16 %v256
      %v464 = vunpack.c.l.b16 %v257
      %v465 = vunpack.c.h.b16 %v257
      %v466 = vunpack.c.l.b16 %v258
      %v467 = vunpack.c.h.b16 %v258
      %v468 = vunpack.c.l.b16 %v259
      %v469 = vunpack.c.h.b16 %v259
      %v470 = vunpack.c.l.b16 %v260
      %v471 = vunpack.c.h.b16 %v260
      %v472 = vunpack.c.l.b16 %v261
      %v473 = vunpack.c.h.b16 %v261
      %v474 = vunpack.c.l.b16 %v262
      %v475 = vunpack.c.h.b16 %v262
      %v476 = vunpack.c.l.b16 %v263
      %v477 = vunpack.c.h.b16 %v263
      %v478 = vunpack.c.l.b16 %v264
      %v479 = vunpack.c.h.b16 %v264
      %v480 = vunpack.c.l.b16 %v265
      %v481 = vunpack.c.h.b16 %v265
      %v482 = vunpack.c.l.b16 %v266
      %v483 = vunpack.c.h.b16 %v266
      %v484 = vunpack.c.l.b16 %v267
      %v485 = vunpack.c.h.b16 %v267
      %v486 = vpack.c.b16 %v360, %v358
      %v487 = vpack.c.b16 %v361, %v359
      %v488 = vpack.c.b16 %v364, %v362
      %v489 = vpack.c.b16 %v365, %v363
      %v490 = vpack.c.b16 %v368, %v366
      %v491 = vpack.c.b16 %v369, %v367
      %v492 = vpack.c.b16 %v372, %v370
      %v493 = vpack.c.b16 %v373, %v371
      %v494 = vpack.c.b16 %v376, %v374
      %v495 = vpack.c.b16 %v377, %v375
      %v496 = vpack.c.b16 %v380, %v378
      %v497 = vpack.c.b16 %v381, %v379
      %v498 = vpack.c.b16 %v384, %v382
      %v499 = vpack.c.b16 %v385, %v383
      %v500 = vpack.c.b16 %v388, %v386
      %v501 = vpack.c.b16 %v389, %v387
      %v502 = vpack.c.b16 %v392, %v390
      %v503 = vpack.c.b16 %v393, %v391
      %v504 = vpack.c.b16 %v396, %v394
      %v505 = vpack.c.b16 %v397, %v395
      %v506 = vpack.c.b16 %v400, %v398
      %v507 = vpack.c.b16 %v401, %v399
      %v508 = vpack.c.b16 %v404, %v402
      %v509 = vpack.c.b16 %v405, %v403
      %v510 = vpack.c.b16 %v408, %v406
      %v511 = vpack.c.b16 %v409, %v407
      %v512 = vpack.c.b16 %v412, %v410
      %v513 = vpack.c.b16 %v413, %v411
      %v514 = vpack.c.b16 %v416, %v414
      %v515 = vpack.c.b16 %v417, %v415
      %v516 = vpack.c.b16 %v420, %v418
      %v517 = vpack.c.b16 %v421, %v419
      %v518 = vpack.c.b16 %v424, %v422
      %v519 = vpack.c.b16 %v425, %v423
      %v520 = vpack.c.b16 %v428, %v426
      %v521 = vpack.c.b16 %v429, %v427
      %v522 = vpack.c.b16 %v432, %v430
      %v523 = vpack.c.b16 %v433, %v431
      %v524 = vpack.c.b16 %v436, %v434
      %v525 = vpack.c.b16 %v437, %v435
      %v526 = vpack.c.b16 %v440, %v438
      %v527 = vpack.c.b16 %v441, %v439
      %v528 = vpack.c.b16 %v444, %v442
      %v529 = vpack.c.b16 %v445, %v443
      %v530 = vpack.c.b16 %v448, %v446
      %v531 = vpack.c.b16 %v449, %v447
      %v532 = vpack.c.b16 %v452, %v450
      %v533 = vpack.c.b16 %v453, %v451
      %v534 = vpack.c.b16 %v456, %v454
      %v535 = vpack.c.b16 %v457, %v455
      %v536 = vpack.c.b16 %v460, %v458
      %v537 = vpack.c.b16 %v461, %v459
      %v538 = vpack.c.b16 %v464, %v462
      %v539 = vpack.c.b16 %v465, %v463
      %v540 = vpack.c.b16 %v468, %v466
      %v541 = vpack.c.b16 %v469, %v467
      %v542 = vpack.c.b16 %v472, %v470
      %v543 = vpack.c.b16 %v473, %v471
      %v544 = vpack.c.b16 %v476, %v474
      %v545 = vpack.c.b16 %v477, %v475
      %v546 = vpack.c.b16 %v480, %v478
      %v547 = vpack.c.b16 %v481, %v479
      %v548 = vpack.c.b16 %v484, %v482
      %v549 = vpack.c.b16 %v485, %v483
      %v601 = vunpack.c.l.b16 %v268
      %v602 = vunpack.c.l.b16 %v269
      %v603 = vunpack.c.l.b16 %v270
      %v604 = vunpack.c.l.b16 %v271
      %v605 = vunpack.c.l.b16 %v272
      %v606 = vunpack.c.l.b16 %v273
      %v607 = vunpack.c.l.b16 %v274
      %v608 = vunpack.c.l.b16 %v275
      %v609 = vunpack.c.l.b16 %v276
      %v610 = vunpack.c.l.b16 %v277
      %v611 = vunpack.c.l.b16 %v278
      %v612 = vunpack.c.l.b16 %v279
      %v613 = vunpack.c.l.b16 %v280
      %v614 = vunpack.c.l.b16 %v281
      %v615 = vunpack.c.l.b16 %v282
      %v616 = vunpack.c.l.b16 %v283
      %v617 = vunpack.c.l.b16 %v284
      %v618 = vunpack.c.l.b16 %v285
      %v619 = vunpack.c.l.b16 %v286
      %v620 = vpack.c.b16 %v602, %v601
      %v621 = vpack.c.b16 %v604, %v603
      %v622 = vpack.c.b16 %v606, %v605
      %v623 = vpack.c.b16 %v608, %v607
      %v624 = vpack.c.b16 %v610, %v609
      %v625 = vpack.c.b16 %v612, %v611
      %v626 = vpack.c.b16 %v614, %v613
      %v627 = vpack.c.b16 %v616, %v615
      %v628 = vpack.c.b16 %v618, %v617
      %v629 = vpack.c.b16 %v619, %v619
      %vm639 = vcmask 154624
      %v641 = vsel %vm639, %v487, 0
      %v644 = vsel %vm639, %v489, 0
      %v647 = vsel %vm639, %v491, 0
      %v650 = vsel %vm639, %v493, 0
      %v653 = vsel %vm639, %v495, 0
      %v656 = vsel %vm639, %v497, 0
      %v659 = vsel %vm639, %v499, 0
      %v662 = vsel %vm639, %v501, 0
      %v665 = vsel %vm639, %v503, 0
      %v668 = vsel %vm639, %v505, 0
      %v671 = vsel %vm639, %v507, 0
      %v674 = vsel %vm639, %v509, 0
      %v677 = vsel %vm639, %v511, 0
      %v680 = vsel %vm639, %v513, 0
      %v683 = vsel %vm639, %v515, 0
      %v686 = vsel %vm639, %v517, 0
      %v689 = vsel %vm639, %v519, 0
      %v692 = vsel %vm639, %v521, 0
      %v695 = vsel %vm639, %v523, 0
      %v698 = vsel %vm639, %v525, 0
      %v701 = vsel %vm639, %v527, 0
      %v704 = vsel %vm639, %v529, 0
      %v707 = vsel %vm639, %v531, 0
      %v710 = vsel %vm639, %v533, 0
      %v713 = vsel %vm639, %v535, 0
      %v716 = vsel %vm639, %v537, 0
      %v719 = vsel %vm639, %v539, 0
      %v722 = vsel %vm639, %v541, 0
      %v725 = vsel %vm639, %v543, 0
      %v728 = vsel %vm639, %v545, 0
      %v731 = vsel %vm639, %v547, 0
      %v734 = vsel %vm639, %v549, 0
      %vm736 = vcmask 1040384
      %vm737 = vcmask 1041408
      %v738 = vsel %vm736, 4294967295, 65535
      %v739 = vsel %vm737, %v738, 0
      %v741 = vand.u32 %v629, %v739
      %743 = vmatprep.subr.bf16.mxu0 0
      %744 = vmatpush1.bf16.msra.mxu0 %v627
      %745 = vmatprep.subr.bf16.mxu0 0
      %746 = vmatpush1.bf16.msra.mxu0 %v626
      %747 = vmatprep.subr.bf16.mxu0 0
      %748 = vmatpush1.bf16.msra.mxu0 %v625
      %749 = vmatprep.subr.bf16.mxu0 0
      %750 = vmatpush1.bf16.msra.mxu0 %v624
      %751 = vmatprep.subr.bf16.mxu0 0
      %752 = vmatpush1.bf16.msra.mxu0 %v623
      %753 = vmatprep.subr.bf16.mxu0 0
      %754 = vmatpush1.bf16.msra.mxu0 %v622
      %755 = vmatprep.subr.bf16.mxu0 0
      %756 = vmatpush1.bf16.msra.mxu0 %v621
      %757 = vmatprep.subr.bf16.mxu0 0
      %758 = vmatpush1.bf16.msra.mxu0 %v620
      %759 = vmatprep.subr.bf16.mxu0 0
      %760 = vmatpush2.bf16.msra.mxu0 0
      %761 = vmatprep.subr.bf16.mxu0 0
      %762 = vmatpush2.bf16.msra.mxu0 0
      %763 = vmatprep.subr.bf16.mxu0 0
      %764 = vmatpush2.bf16.msra.mxu0 0
      %765 = vmatprep.subr.bf16.mxu0 0
      %766 = vmatpush2.bf16.msra.mxu0 0
      %767 = vmatprep.subr.bf16.mxu0 0
      %768 = vmatpush2.bf16.msra.mxu0 0
      %769 = vmatprep.subr.bf16.mxu0 0
      %770 = vmatpush2.bf16.msra.mxu0 0
      %771 = vmatprep.subr.bf16.mxu0 0
      %772 = vmatpush2.bf16.msra.mxu0 %v741
      %773 = vmatprep.subr.bf16.mxu0 0
      %774 = vmatpush2.bf16.msra.mxu0 %v628
      %775 = vmatprep.mubr.bf16.mxu0 %v641
      %776 = vmatmul.mubr.bf16.gmra.mxu0 %v486
      %v777 = vpop.f32.mrf.mxu0
      %v778 = vadd.f32 %v292, %v777
      %v779 = vpop.f32.mrf.mxu0
      %v780 = vpop.f32.mrf.mxu0
      %v781 = vadd.f32 %v292, %v780
      %v782 = vpop.f32.mrf.mxu0
      %783 = vmatprep.mubr.bf16.mxu0 %v644
      %784 = vmatmul.mubr.bf16.gmra.mxu0 %v488
      %v785 = vpop.f32.mrf.mxu0
      %v786 = vadd.f32 %v292, %v785
      %v787 = vpop.f32.mrf.mxu0
      %v788 = vpop.f32.mrf.mxu0
      %v789 = vadd.f32 %v292, %v788
      %v790 = vpop.f32.mrf.mxu0
      %791 = vmatprep.mubr.bf16.mxu0 %v647
      %792 = vmatmul.mubr.bf16.gmra.mxu0 %v490
      %v793 = vpop.f32.mrf.mxu0
      %v794 = vadd.f32 %v292, %v793
      %v795 = vpop.f32.mrf.mxu0
      %v796 = vpop.f32.mrf.mxu0
      %v797 = vadd.f32 %v292, %v796
      %v798 = vpop.f32.mrf.mxu0
      %799 = vmatprep.mubr.bf16.mxu0 %v650
      %800 = vmatmul.mubr.bf16.gmra.mxu0 %v492
      %v801 = vpop.f32.mrf.mxu0
      %v802 = vadd.f32 %v292, %v801
      %v803 = vpop.f32.mrf.mxu0
      %v804 = vpop.f32.mrf.mxu0
      %v805 = vadd.f32 %v292, %v804
      %v806 = vpop.f32.mrf.mxu0
      %807 = vmatprep.mubr.bf16.mxu0 %v653
      %808 = vmatmul.mubr.bf16.gmra.mxu0 %v494
      %v809 = vpop.f32.mrf.mxu0
      %v810 = vadd.f32 %v292, %v809
      %v811 = vpop.f32.mrf.mxu0
      %v812 = vpop.f32.mrf.mxu0
      %v813 = vadd.f32 %v292, %v812
      %v814 = vpop.f32.mrf.mxu0
      %815 = vmatprep.mubr.bf16.mxu0 %v656
      %816 = vmatmul.mubr.bf16.gmra.mxu0 %v496
      %v817 = vpop.f32.mrf.mxu0
      %v818 = vadd.f32 %v292, %v817
      %v819 = vpop.f32.mrf.mxu0
      %v820 = vpop.f32.mrf.mxu0
      %v821 = vadd.f32 %v292, %v820
      %v822 = vpop.f32.mrf.mxu0
      %823 = vmatprep.mubr.bf16.mxu0 %v659
      %824 = vmatmul.mubr.bf16.gmra.mxu0 %v498
      %v825 = vpop.f32.mrf.mxu0
      %v826 = vadd.f32 %v292, %v825
      %v827 = vpop.f32.mrf.mxu0
      %v828 = vpop.f32.mrf.mxu0
      %v829 = vadd.f32 %v292, %v828
      %v830 = vpop.f32.mrf.mxu0
      %831 = vmatprep.mubr.bf16.mxu0 %v662
      %832 = vmatmul.mubr.bf16.gmra.mxu0 %v500
      %v833 = vpop.f32.mrf.mxu0
      %v834 = vadd.f32 %v292, %v833
      %v835 = vpop.f32.mrf.mxu0
      %v836 = vpop.f32.mrf.mxu0
      %v837 = vadd.f32 %v292, %v836
      %v838 = vpop.f32.mrf.mxu0
      %839 = vmatprep.mubr.bf16.mxu0 %v665
      %840 = vmatmul.mubr.bf16.gmra.mxu0 %v502
      %v841 = vpop.f32.mrf.mxu0
      %v842 = vadd.f32 %v292, %v841
      %v843 = vpop.f32.mrf.mxu0
      %v844 = vpop.f32.mrf.mxu0
      %v845 = vadd.f32 %v292, %v844
      %v846 = vpop.f32.mrf.mxu0
      %847 = vmatprep.mubr.bf16.mxu0 %v668
      %848 = vmatmul.mubr.bf16.gmra.mxu0 %v504
      %v849 = vpop.f32.mrf.mxu0
      %v850 = vadd.f32 %v292, %v849
      %v851 = vpop.f32.mrf.mxu0
      %v852 = vpop.f32.mrf.mxu0
      %v853 = vadd.f32 %v292, %v852
      %v854 = vpop.f32.mrf.mxu0
      %855 = vmatprep.mubr.bf16.mxu0 %v671
      %856 = vmatmul.mubr.bf16.gmra.mxu0 %v506
      %v857 = vpop.f32.mrf.mxu0
      %v858 = vadd.f32 %v292, %v857
      %v859 = vpop.f32.mrf.mxu0
      %v860 = vpop.f32.mrf.mxu0
      %v861 = vadd.f32 %v292, %v860
      %v862 = vpop.f32.mrf.mxu0
      %863 = vmatprep.mubr.bf16.mxu0 %v674
      %864 = vmatmul.mubr.bf16.gmra.mxu0 %v508
      %v865 = vpop.f32.mrf.mxu0
      %v866 = vadd.f32 %v292, %v865
      %v867 = vpop.f32.mrf.mxu0
      %v868 = vpop.f32.mrf.mxu0
      %v869 = vadd.f32 %v292, %v868
      %v870 = vpop.f32.mrf.mxu0
      %871 = vmatprep.mubr.bf16.mxu0 %v677
      %872 = vmatmul.mubr.bf16.gmra.mxu0 %v510
      %v873 = vpop.f32.mrf.mxu0
      %v874 = vadd.f32 %v292, %v873
      %v875 = vpop.f32.mrf.mxu0
      %v876 = vpop.f32.mrf.mxu0
      %v877 = vadd.f32 %v292, %v876
      %v878 = vpop.f32.mrf.mxu0
      %879 = vmatprep.mubr.bf16.mxu0 %v680
      %880 = vmatmul.mubr.bf16.gmra.mxu0 %v512
      %v881 = vpop.f32.mrf.mxu0
      %v882 = vadd.f32 %v292, %v881
      %v883 = vpop.f32.mrf.mxu0
      %v884 = vpop.f32.mrf.mxu0
      %v885 = vadd.f32 %v292, %v884
      %v886 = vpop.f32.mrf.mxu0
      %887 = vmatprep.mubr.bf16.mxu0 %v683
      %888 = vmatmul.mubr.bf16.gmra.mxu0 %v514
      %v889 = vpop.f32.mrf.mxu0
      %v890 = vadd.f32 %v292, %v889
      %v891 = vpop.f32.mrf.mxu0
      %v892 = vpop.f32.mrf.mxu0
      %v893 = vadd.f32 %v292, %v892
      %v894 = vpop.f32.mrf.mxu0
      %895 = vmatprep.mubr.bf16.mxu0 %v686
      %896 = vmatmul.mubr.bf16.gmra.mxu0 %v516
      %v897 = vpop.f32.mrf.mxu0
      %v898 = vadd.f32 %v292, %v897
      %v899 = vpop.f32.mrf.mxu0
      %v900 = vpop.f32.mrf.mxu0
      %v901 = vadd.f32 %v292, %v900
      %v902 = vpop.f32.mrf.mxu0
      %903 = vmatprep.mubr.bf16.mxu0 %v689
      %904 = vmatmul.mubr.bf16.gmra.mxu0 %v518
      %v905 = vpop.f32.mrf.mxu0
      %v906 = vadd.f32 %v292, %v905
      %v907 = vpop.f32.mrf.mxu0
      %v908 = vpop.f32.mrf.mxu0
      %v909 = vadd.f32 %v292, %v908
      %v910 = vpop.f32.mrf.mxu0
      %911 = vmatprep.mubr.bf16.mxu0 %v692
      %912 = vmatmul.mubr.bf16.gmra.mxu0 %v520
      %v913 = vpop.f32.mrf.mxu0
      %v914 = vadd.f32 %v292, %v913
      %v915 = vpop.f32.mrf.mxu0
      %v916 = vpop.f32.mrf.mxu0
      %v917 = vadd.f32 %v292, %v916
      %v918 = vpop.f32.mrf.mxu0
      %919 = vmatprep.mubr.bf16.mxu0 %v695
      %920 = vmatmul.mubr.bf16.gmra.mxu0 %v522
      %v921 = vpop.f32.mrf.mxu0
      %v922 = vadd.f32 %v292, %v921
      %v923 = vpop.f32.mrf.mxu0
      %v924 = vpop.f32.mrf.mxu0
      %v925 = vadd.f32 %v292, %v924
      %v926 = vpop.f32.mrf.mxu0
      %927 = vmatprep.mubr.bf16.mxu0 %v698
      %928 = vmatmul.mubr.bf16.gmra.mxu0 %v524
      %v929 = vpop.f32.mrf.mxu0
      %v930 = vadd.f32 %v292, %v929
      %v931 = vpop.f32.mrf.mxu0
      %v932 = vpop.f32.mrf.mxu0
      %v933 = vadd.f32 %v292, %v932
      %v934 = vpop.f32.mrf.mxu0
      %935 = vmatprep.mubr.bf16.mxu0 %v701
      %936 = vmatmul.mubr.bf16.gmra.mxu0 %v526
      %v937 = vpop.f32.mrf.mxu0
      %v938 = vadd.f32 %v292, %v937
      %v939 = vpop.f32.mrf.mxu0
      %v940 = vpop.f32.mrf.mxu0
      %v941 = vadd.f32 %v292, %v940
      %v942 = vpop.f32.mrf.mxu0
      %943 = vmatprep.mubr.bf16.mxu0 %v704
      %944 = vmatmul.mubr.bf16.gmra.mxu0 %v528
      %v945 = vpop.f32.mrf.mxu0
      %v946 = vadd.f32 %v292, %v945
      %v947 = vpop.f32.mrf.mxu0
      %v948 = vpop.f32.mrf.mxu0
      %v949 = vadd.f32 %v292, %v948
      %v950 = vpop.f32.mrf.mxu0
      %951 = vmatprep.mubr.bf16.mxu0 %v707
      %952 = vmatmul.mubr.bf16.gmra.mxu0 %v530
      %v953 = vpop.f32.mrf.mxu0
      %v954 = vadd.f32 %v292, %v953
      %v955 = vpop.f32.mrf.mxu0
      %v956 = vpop.f32.mrf.mxu0
      %v957 = vadd.f32 %v292, %v956
      %v958 = vpop.f32.mrf.mxu0
      %959 = vmatprep.mubr.bf16.mxu0 %v710
      %960 = vmatmul.mubr.bf16.gmra.mxu0 %v532
      %v961 = vpop.f32.mrf.mxu0
      %v962 = vadd.f32 %v292, %v961
      %v963 = vpop.f32.mrf.mxu0
      %v964 = vpop.f32.mrf.mxu0
      %v965 = vadd.f32 %v292, %v964
      %v966 = vpop.f32.mrf.mxu0
      %967 = vmatprep.mubr.bf16.mxu0 %v713
      %968 = vmatmul.mubr.bf16.gmra.mxu0 %v534
      %v969 = vpop.f32.mrf.mxu0
      %v970 = vadd.f32 %v292, %v969
      %v971 = vpop.f32.mrf.mxu0
      %v972 = vpop.f32.mrf.mxu0
      %v973 = vadd.f32 %v292, %v972
      %v974 = vpop.f32.mrf.mxu0
      %975 = vmatprep.mubr.bf16.mxu0 %v716
      %976 = vmatmul.mubr.bf16.gmra.mxu0 %v536
      %v977 = vpop.f32.mrf.mxu0
      %v978 = vadd.f32 %v292, %v977
      %v979 = vpop.f32.mrf.mxu0
      %v980 = vpop.f32.mrf.mxu0
      %v981 = vadd.f32 %v292, %v980
      %v982 = vpop.f32.mrf.mxu0
      %983 = vmatprep.mubr.bf16.mxu0 %v719
      %984 = vmatmul.mubr.bf16.gmra.mxu0 %v538
      %v985 = vpop.f32.mrf.mxu0
      %v986 = vadd.f32 %v292, %v985
      %v987 = vpop.f32.mrf.mxu0
      %v988 = vpop.f32.mrf.mxu0
      %v989 = vadd.f32 %v292, %v988
      %v990 = vpop.f32.mrf.mxu0
      %991 = vmatprep.mubr.bf16.mxu0 %v722
      %992 = vmatmul.mubr.bf16.gmra.mxu0 %v540
      %v993 = vpop.f32.mrf.mxu0
      %v994 = vadd.f32 %v292, %v993
      %v995 = vpop.f32.mrf.mxu0
      %v996 = vpop.f32.mrf.mxu0
      %v997 = vadd.f32 %v292, %v996
      %v998 = vpop.f32.mrf.mxu0
      %999 = vmatprep.mubr.bf16.mxu0 %v725
      %1000 = vmatmul.mubr.bf16.gmra.mxu0 %v542
      %v1001 = vpop.f32.mrf.mxu0
      %v1002 = vadd.f32 %v292, %v1001
      %v1003 = vpop.f32.mrf.mxu0
      %v1004 = vpop.f32.mrf.mxu0
      %v1005 = vadd.f32 %v292, %v1004
      %v1006 = vpop.f32.mrf.mxu0
      %1007 = vmatprep.mubr.bf16.mxu0 %v728
      %1008 = vmatmul.mubr.bf16.gmra.mxu0 %v544
      %v1009 = vpop.f32.mrf.mxu0
      %v1010 = vadd.f32 %v292, %v1009
      %v1011 = vpop.f32.mrf.mxu0
      %v1012 = vpop.f32.mrf.mxu0
      %v1013 = vadd.f32 %v292, %v1012
      %v1014 = vpop.f32.mrf.mxu0
      %1015 = vmatprep.mubr.bf16.mxu0 %v731
      %1016 = vmatmul.mubr.bf16.gmra.mxu0 %v546
      %v1017 = vpop.f32.mrf.mxu0
      %v1018 = vadd.f32 %v292, %v1017
      %v1019 = vpop.f32.mrf.mxu0
      %v1020 = vpop.f32.mrf.mxu0
      %v1021 = vadd.f32 %v292, %v1020
      %v1022 = vpop.f32.mrf.mxu0
      %1023 = vmatprep.mubr.bf16.mxu0 %v734
      %1024 = vmatmul.mubr.bf16.gmra.mxu0 %v548
      %v1025 = vpop.f32.mrf.mxu0
      %v1026 = vadd.f32 %v292, %v1025
      %v1027 = vpop.f32.mrf.mxu0
      %v1028 = vpop.f32.mrf.mxu0
      %v1029 = vadd.f32 %v292, %v1028
      %v1030 = vpop.f32.mrf.mxu0
      %1031 = vdwg.mxu0
      %v1032 = vmax.f32 %v778, 0.0
      %v1033 = vmax.f32 %v781, 0.0
      %v1034 = vmax.f32 %v786, 0.0
      %v1035 = vmax.f32 %v789, 0.0
      %v1036 = vmax.f32 %v794, 0.0
      %v1037 = vmax.f32 %v797, 0.0
      %v1038 = vmax.f32 %v802, 0.0
      %v1039 = vmax.f32 %v805, 0.0
      %v1040 = vmax.f32 %v810, 0.0
      %v1041 = vmax.f32 %v813, 0.0
      %v1042 = vmax.f32 %v818, 0.0
      %v1043 = vmax.f32 %v821, 0.0
      %v1044 = vmax.f32 %v826, 0.0
      %v1045 = vmax.f32 %v829, 0.0
      %v1046 = vmax.f32 %v834, 0.0
      %v1047 = vmax.f32 %v837, 0.0
      %v1048 = vmax.f32 %v842, 0.0
      %v1049 = vmax.f32 %v845, 0.0
      %v1050 = vmax.f32 %v850, 0.0
      %v1051 = vmax.f32 %v853, 0.0
      %v1052 = vmax.f32 %v858, 0.0
      %v1053 = vmax.f32 %v861, 0.0
      %v1054 = vmax.f32 %v866, 0.0
      %v1055 = vmax.f32 %v869, 0.0
      %v1056 = vmax.f32 %v874, 0.0
      %v1057 = vmax.f32 %v877, 0.0
      %v1058 = vmax.f32 %v882, 0.0
      %v1059 = vmax.f32 %v885, 0.0
      %v1060 = vmax.f32 %v890, 0.0
      %v1061 = vmax.f32 %v893, 0.0
      %v1062 = vmax.f32 %v898, 0.0
      %v1063 = vmax.f32 %v901, 0.0
      %v1064 = vmax.f32 %v906, 0.0
      %v1065 = vmax.f32 %v909, 0.0
      %v1066 = vmax.f32 %v914, 0.0
      %v1067 = vmax.f32 %v917, 0.0
      %v1068 = vmax.f32 %v922, 0.0
      %v1069 = vmax.f32 %v925, 0.0
      %v1070 = vmax.f32 %v930, 0.0
      %v1071 = vmax.f32 %v933, 0.0
      %v1072 = vmax.f32 %v938, 0.0
      %v1073 = vmax.f32 %v941, 0.0
      %v1074 = vmax.f32 %v946, 0.0
      %v1075 = vmax.f32 %v949, 0.0
      %v1076 = vmax.f32 %v954, 0.0
      %v1077 = vmax.f32 %v957, 0.0
      %v1078 = vmax.f32 %v962, 0.0
      %v1079 = vmax.f32 %v965, 0.0
      %v1080 = vmax.f32 %v970, 0.0
      %v1081 = vmax.f32 %v973, 0.0
      %v1082 = vmax.f32 %v978, 0.0
      %v1083 = vmax.f32 %v981, 0.0
      %v1084 = vmax.f32 %v986, 0.0
      %v1085 = vmax.f32 %v989, 0.0
      %v1086 = vmax.f32 %v994, 0.0
      %v1087 = vmax.f32 %v997, 0.0
      %v1088 = vmax.f32 %v1002, 0.0
      %v1089 = vmax.f32 %v1005, 0.0
      %v1090 = vmax.f32 %v1010, 0.0
      %v1091 = vmax.f32 %v1013, 0.0
      %v1092 = vmax.f32 %v1018, 0.0
      %v1093 = vmax.f32 %v1021, 0.0
      %v1094 = vmax.f32 %v1026, 0.0
      %v1095 = vmax.f32 %v1029, 0.0
      %v1096 = vld [vmem:[#allocation2] sm:$0x1]
      %v1097 = vadd.f32 %v1032, %v1033
      %v1098 = vadd.f32 %v1097, %v1034
      %v1099 = vadd.f32 %v1098, %v1035
      %v1100 = vadd.f32 %v1099, %v1036
      %v1101 = vadd.f32 %v1100, %v1037
      %v1102 = vadd.f32 %v1101, %v1038
      %v1103 = vadd.f32 %v1102, %v1039
      %v1104 = vadd.f32 %v1103, %v1040
      %v1105 = vadd.f32 %v1104, %v1041
      %v1106 = vadd.f32 %v1105, %v1042
      %v1107 = vadd.f32 %v1106, %v1043
      %v1108 = vadd.f32 %v1107, %v1044
      %v1109 = vadd.f32 %v1108, %v1045
      %v1110 = vadd.f32 %v1109, %v1046
      %v1111 = vadd.f32 %v1110, %v1047
      %v1112 = vadd.f32 %v1111, %v1048
      %v1113 = vadd.f32 %v1112, %v1049
      %v1114 = vadd.f32 %v1113, %v1050
      %v1115 = vadd.f32 %v1114, %v1051
      %v1116 = vadd.f32 %v1115, %v1052
      %v1117 = vadd.f32 %v1116, %v1053
      %v1118 = vadd.f32 %v1117, %v1054
      %v1119 = vadd.f32 %v1118, %v1055
      %v1120 = vadd.f32 %v1119, %v1056
      %v1121 = vadd.f32 %v1120, %v1057
      %v1122 = vadd.f32 %v1121, %v1058
      %v1123 = vadd.f32 %v1122, %v1059
      %v1124 = vadd.f32 %v1123, %v1060
      %v1125 = vadd.f32 %v1124, %v1061
      %v1126 = vadd.f32 %v1125, %v1062
      %v1127 = vadd.f32 %v1126, %v1063
      %v1128 = vadd.f32 %v1127, %v1064
      %v1129 = vadd.f32 %v1128, %v1065
      %v1130 = vadd.f32 %v1129, %v1066
      %v1131 = vadd.f32 %v1130, %v1067
      %v1132 = vadd.f32 %v1131, %v1068
      %v1133 = vadd.f32 %v1132, %v1069
      %v1134 = vadd.f32 %v1133, %v1070
      %v1135 = vadd.f32 %v1134, %v1071
      %v1136 = vadd.f32 %v1135, %v1072
      %v1137 = vadd.f32 %v1136, %v1073
      %v1138 = vadd.f32 %v1137, %v1074
      %v1139 = vadd.f32 %v1138, %v1075
      %v1140 = vadd.f32 %v1139, %v1076
      %v1141 = vadd.f32 %v1140, %v1077
      %v1142 = vadd.f32 %v1141, %v1078
      %v1143 = vadd.f32 %v1142, %v1079
      %v1144 = vadd.f32 %v1143, %v1080
      %v1145 = vadd.f32 %v1144, %v1081
      %v1146 = vadd.f32 %v1145, %v1082
      %v1147 = vadd.f32 %v1146, %v1083
      %v1148 = vadd.f32 %v1147, %v1084
      %v1149 = vadd.f32 %v1148, %v1085
      %v1150 = vadd.f32 %v1149, %v1086
      %v1151 = vadd.f32 %v1150, %v1087
      %v1152 = vadd.f32 %v1151, %v1088
      %v1153 = vadd.f32 %v1152, %v1089
      %v1154 = vadd.f32 %v1153, %v1090
      %v1155 = vadd.f32 %v1154, %v1091
      %v1156 = vadd.f32 %v1155, %v1092
      %v1157 = vadd.f32 %v1156, %v1093
      %v1158 = vadd.f32 %v1157, %v1094
      %v1159 = vadd.f32 %v1158, %v1095
      %v1160 = vrot.slane %v1159, 4
      %v1161 = vadd.f32 %v1159, %v1160
      %v1162 = vrot.slane %v1161, 2
      %v1163 = vadd.f32 %v1161, %v1162
      %v1164 = vrot.slane %v1163, 1
      %v1165 = vadd.f32 %v1163, %v1164
      %v1166 = vadd.f32 %v1096, %v1165
      %1167 = vst [vmem:[#allocation2] sm:$0x1] %v1166
      %p1168 = scmp.eq.s32.totalorder %s19, 1
      // Predicated region
      $region37: #{encoder_cnn_forward.2} parent=31 // pred_check
        %p1169 = pneg %p1168
      $region38: #{encoder_cnn_forward.2} parent=31 // pred_check_branch
        %1171 = sbr.rel (%p1169) target = $region40
      $region39: #{encoder_cnn_forward.2} parent=31 // pred_region
        %v1172 = vld [vmem:[#allocation2] sm:$0x1]
        %v1173 = vld [vmem:[%s2] sm:$0x1]
        %v1174 = vmax.f32 %v1173, 0.0
        %v1175 = vmul.f32 %v1174, 240.0
        %v1176 = vsub.f32 %v1172, %v1175
        %v1177 = vmul.f32 %v1176, 0.0012755102
        %v1178 = vpack.c.bf16 %v1177, %v1177
        %vm1179 = vcmask 1040384
        %vm1180 = vsmask.f32 256
        %vm1181 = vmand %vm1179, %vm1180
        %v1182 = vld [vmem:[%s197] sm:$0x1]
        %v1183 = vsel %vm1181, %v1178, %v1182
        %1184 = vst [vmem:[%s197] sm:$0x1] %v1183
      $region40: #{encoder_cnn_forward.2} parent=31 // pred_fallthru
        _
      %p1185 = scmp.lt.s32.totalorder %s18, 3
      %s1186 = scalar_select %p1185, %s18, 3
      %s1187 = scalar_lea.vmem %s3, %s1186
      // Predicated region
      $region41: #{encoder_cnn_forward.2} parent=31 // pred_check
        %p1188 = pneg %p114
      $region42: #{encoder_cnn_forward.2} parent=31 // pred_check_branch
        %1190 = sbr.rel (%p1188) target = $region44
      $region43: #{encoder_cnn_forward.2} parent=31 // pred_region
        _
      $region44: #{encoder_cnn_forward.2} parent=31 // pred_fallthru
        _
    $region32: #{encoder_cnn_forward.2} parent=5 // pred_fallthru
      _
    %p1191 = scmp.le.s32.totalorder 2, %s9
    // Predicated region
    $region45: #{encoder_cnn_forward.2} parent=5 // pred_check
      %p1192 = pneg %p1191
    $region46: #{encoder_cnn_forward.2} parent=5 // pred_check_branch
      %1194 = sbr.rel (%p1192) target = $region48
    $region47: #{encoder_cnn_forward.2} parent=5 // pred_region
      %s1195 = ssub.s32 %s9, 2
      // Predicated region
      $region49: #{encoder_cnn_forward.2} parent=47 // pred_check
        %p1196 = pneg %p120
      $region50: #{encoder_cnn_forward.2} parent=47 // pred_check_branch
        %1198 = sbr.rel (%p1196) target = $region52
      $region51: #{encoder_cnn_forward.2} parent=47 // pred_region
        %p1199 = scmp.lt.s32.totalorder %s20, 3
        %s1200 = scalar_select %p1199, %s20, 3
        %s1201 = scalar_lea.vmem %s3, %s1200
      $region52: #{encoder_cnn_forward.2} parent=47 // pred_fallthru
        _
    $region48: #{encoder_cnn_forward.2} parent=5 // pred_fallthru
      _
  $region6: #{encoder_cnn_forward.2} parent=0 // loop_footer
    %s13 = sadd.s32 1, %s9
  $region7: #{encoder_cnn_forward.2} parent=0 // loop_footer_branch
    %8 = sbr.rel target = $region3
  $region8: #{encoder_cnn_forward.2} parent=0 // loop_exit
    _

// kernel: encoder_cnn_forward.3
$region0: #{encoder_cnn_forward.3}
  #allocation0 [shape = 'u32[]', space=smem, size = 0x4, offset = 0x4, fixed_abs, tag = 'smem constant byte address 0x4 - core index']
  #allocation1 [shape = 'u32[144,128]{1,0:T(1,128)}', space=vmem, size = 0x12000, scoped, tag = 'internal scratch']
  %s0 = inlined_call_operand.vmem [shape: bf16[4,128], index: 0, kind: input, shape index: {}]
  %s1 = inlined_call_operand.vmem [shape: bf16[128,128], index: 1, kind: input, shape index: {}]
  %s2 = inlined_call_operand.vmem [shape: f32[1,128], index: 2, kind: input, shape index: {}]
  %s3 = inlined_call_operand.vmem [shape: f32[1,128], index: 3, kind: input, shape index: {}]
  %s4 = inlined_call_operand.vmem [shape: f32[1,128], index: 4, kind: input, shape index: {}]
  %s5 = inlined_call_operand.hbm [shape: f32[4,128], index: 5, kind: output, shape index: {}]
  %s6 = sld [smem:[#allocation0]]
  $region30: #{encoder_cnn_forward.3} parent=0
    _
  %s8 = ssub.s32 1, %s6
  %s9 = scalar_select 0, %s8, %s6
  $region1: #{encoder_cnn_forward.3} parent=0
    #allocation2 [shape = 'u8[2048]{0}', space=vmem, size = 0x800, scoped, tag = 'output window, operand 0, single buffered']
    #allocation3 [shape = 's32[1]{0}', space=sflag, size = 0x4, scoped, tag = 'scoped memory for encoder_cnn_forward.3']
    %10 = vsyncpa [#allocation3], 0
    // Predicated region
    $region2: #{encoder_cnn_forward.3} parent=1 // pred_check
      _
    $region3: #{encoder_cnn_forward.3} parent=1 // pred_check_branch
      %12 = sbr.rel (0) target = $region5
    $region4: #{encoder_cnn_forward.3} parent=1 // pred_region
      _
    $region5: #{encoder_cnn_forward.3} parent=1 // pred_fallthru
      _
    // Predicated region
    $region6: #{encoder_cnn_forward.3} parent=1 // pred_check
      _
    $region7: #{encoder_cnn_forward.3} parent=1 // pred_check_branch
      %14 = sbr.rel (0) target = $region9
    $region8: #{encoder_cnn_forward.3} parent=1 // pred_region
      _
    $region9: #{encoder_cnn_forward.3} parent=1 // pred_fallthru
      _
    // Predicated region
    $region10: #{encoder_cnn_forward.3} parent=1 // pred_check
      _
    $region11: #{encoder_cnn_forward.3} parent=1 // pred_check_branch
      %16 = sbr.rel (0) target = $region13
    $region12: #{encoder_cnn_forward.3} parent=1 // pred_region
      _
    $region13: #{encoder_cnn_forward.3} parent=1 // pred_fallthru
      _
    // Predicated region
    $region14: #{encoder_cnn_forward.3} parent=1 // pred_check
      _
    $region15: #{encoder_cnn_forward.3} parent=1 // pred_check_branch
      %18 = sbr.rel (0) target = $region17
    $region16: #{encoder_cnn_forward.3} parent=1 // pred_region
      _
    $region17: #{encoder_cnn_forward.3} parent=1 // pred_fallthru
      _
    // Predicated region
    $region18: #{encoder_cnn_forward.3} parent=1 // pred_check
      _
    $region19: #{encoder_cnn_forward.3} parent=1 // pred_check_branch
      %20 = sbr.rel (0) target = $region21
    $region20: #{encoder_cnn_forward.3} parent=1 // pred_region
      _
    $region21: #{encoder_cnn_forward.3} parent=1 // pred_fallthru
      _
    %v22 = vld [vmem:[%s0] sm:$0x3]
    %v23 = vld [vmem:[%s1] sm:$0xf]
    %v24 = vld [vmem:[%s1 + $0x4] sm:$0xf]
    %v25 = vld [vmem:[%s1 + $0x8] sm:$0xf]
    %v26 = vld [vmem:[%s1 + $0xc] sm:$0xf]
    %v27 = vld [vmem:[%s1 + $0x10] sm:$0xf]
    %v28 = vld [vmem:[%s1 + $0x14] sm:$0xf]
    %v29 = vld [vmem:[%s1 + $0x18] sm:$0xf]
    %v30 = vld [vmem:[%s1 + $0x1c] sm:$0xf]
    %v31 = vld [vmem:[%s1 + $0x20] sm:$0xf]
    %v32 = vld [vmem:[%s1 + $0x24] sm:$0xf]
    %v33 = vld [vmem:[%s1 + $0x28] sm:$0xf]
    %v34 = vld [vmem:[%s1 + $0x2c] sm:$0xf]
    %v35 = vld [vmem:[%s1 + $0x30] sm:$0xf]
    %v36 = vld [vmem:[%s1 + $0x34] sm:$0xf]
    %v37 = vld [vmem:[%s1 + $0x38] sm:$0xf]
    %v38 = vld [vmem:[%s1 + $0x3c] sm:$0xf]
    %v39 = vld [vmem:[%s2] sm:$0x1]
    %v41 = vlaneseq
    %v42 = vshrl.u32 %v41, 7
    %v43 = vsub.s32 0, %v42
    %v44 = vrot.slane %v39, %v43
    %v62 = vunpack.c.l.b16 %v23
    %v63 = vunpack.c.l.b16 %v24
    %v64 = vunpack.c.l.b16 %v25
    %v65 = vunpack.c.l.b16 %v26
    %v66 = vunpack.c.l.b16 %v27
    %v67 = vunpack.c.l.b16 %v28
    %v68 = vunpack.c.l.b16 %v29
    %v69 = vunpack.c.l.b16 %v30
    %v70 = vunpack.c.l.b16 %v31
    %v71 = vunpack.c.l.b16 %v32
    %v72 = vunpack.c.l.b16 %v33
    %v73 = vunpack.c.l.b16 %v34
    %v74 = vunpack.c.l.b16 %v35
    %v75 = vunpack.c.l.b16 %v36
    %v76 = vunpack.c.l.b16 %v37
    %v77 = vunpack.c.l.b16 %v38
    %v78 = vpack.c.b16 %v63, %v62
    %v79 = vpack.c.b16 %v65, %v64
    %v80 = vpack.c.b16 %v67, %v66
    %v81 = vpack.c.b16 %v69, %v68
    %v82 = vpack.c.b16 %v71, %v70
    %v83 = vpack.c.b16 %v73, %v72
    %v84 = vpack.c.b16 %v75, %v74
    %v85 = vpack.c.b16 %v77, %v76
    %94 = vmatprep.subr.bf16.mxu0 0
    %95 = vmatpush1.bf16.msra.mxu0 %v85
    %96 = vmatprep.subr.bf16.mxu0 0
    %97 = vmatpush1.bf16.msra.mxu0 %v84
    %98 = vmatprep.subr.bf16.mxu0 0
    %99 = vmatpush1.bf16.msra.mxu0 %v83
    %100 = vmatprep.subr.bf16.mxu0 0
    %101 = vmatpush1.bf16.msra.mxu0 %v82
    %102 = vmatprep.subr.bf16.mxu0 0
    %103 = vmatpush1.bf16.msra.mxu0 %v81
    %104 = vmatprep.subr.bf16.mxu0 0
    %105 = vmatpush1.bf16.msra.mxu0 %v80
    %106 = vmatprep.subr.bf16.mxu0 0
    %107 = vmatpush1.bf16.msra.mxu0 %v79
    %108 = vmatprep.subr.bf16.mxu0 0
    %109 = vmatpush1.bf16.msra.mxu0 %v78
    %110 = vmatprep.subr.bf16.mxu0 0
    %111 = vmatpush2.bf16.msra.mxu0 0
    %112 = vmatprep.subr.bf16.mxu0 0
    %113 = vmatpush2.bf16.msra.mxu0 0
    %114 = vmatprep.subr.bf16.mxu0 0
    %115 = vmatpush2.bf16.msra.mxu0 0
    %116 = vmatprep.subr.bf16.mxu0 0
    %117 = vmatpush2.bf16.msra.mxu0 0
    %118 = vmatprep.subr.bf16.mxu0 0
    %119 = vmatpush2.bf16.msra.mxu0 0
    %120 = vmatprep.subr.bf16.mxu0 0
    %121 = vmatpush2.bf16.msra.mxu0 0
    %122 = vmatprep.subr.bf16.mxu0 0
    %123 = vmatpush2.bf16.msra.mxu0 0
    %124 = vmatprep.subr.bf16.mxu0 0
    %125 = vmatpush2.bf16.msra.mxu0 0
    %126 = vmatprep.mubr.bf16.mxu0 0
    %127 = vmatmul.mubr.bf16.gmra.mxu0 %v22
    %v128 = vpop.f32.mrf.mxu0
    %v129 = vadd.f32 %v44, %v128
    %v130 = vpop.f32.mrf.mxu0
    %v131 = vpop.f32.mrf.mxu0
    %v132 = vpop.f32.mrf.mxu0
    %133 = vdwg.mxu0
    %vm134 = vcmask 1043456
    %v135 = vsel %vm134, %v129, 0.0
    %v136 = vrot.slane %v135, 4
    %v137 = vadd.f32 %v135, %v136
    %v138 = vrot.slane %v137, 2
    %v139 = vadd.f32 %v137, %v138
    %v140 = vrot.slane %v139, 1
    %v141 = vadd.f32 %v139, %v140
    %v142 = vmul.f32 %v141, 0.25
    %v143 = vsub.f32 %v129, %v142
    %v144 = vmul.f32 %v143, %v143
    %v145 = vsel %vm134, %v144, 0.0
    %v146 = vrot.slane %v145, 4
    %v147 = vadd.f32 %v145, %v146
    %v148 = vrot.slane %v147, 2
    %v149 = vadd.f32 %v147, %v148
    %v150 = vrot.slane %v149, 1
    %v151 = vadd.f32 %v149, %v150
    %v152 = vmul.f32 %v151, 0.25
    %v153 = vadd.f32 %v152, 1e-05
    %v154 = vrsqrt.pop %v153
    %v155 = vmul.f32 %v143, %v154
    %v156 = vld [vmem:[%s3] sm:$0x1]
    %v158 = vlaneseq
    %v159 = vshrl.u32 %v158, 7
    %v160 = vsub.s32 0, %v159
    %v161 = vrot.slane %v156, %v160
    %v163 = vmul.f32 %v155, %v161
    %v164 = vld [vmem:[%s4] sm:$0x1]
    %v166 = vlaneseq
    %v167 = vshrl.u32 %v166, 7
    %v168 = vsub.s32 0, %v167
    %v169 = vrot.slane %v164, %v168
    %v171 = vadd.f32 %v163, %v169
    %172 = vst [vmem:[#allocation2] sm:$0xf] %v171
    // Predicated region
    $region22: #{encoder_cnn_forward.3} parent=1 // pred_check
      _
    $region23: #{encoder_cnn_forward.3} parent=1 // pred_check_branch
      %174 = sbr.rel (0) target = $region25
    $region24: #{encoder_cnn_forward.3} parent=1 // pred_region
      %s176 = ssub.s32 64, 64
      %177 = vsyncadd [#allocation3], %s176
      %s179 = sshll.u32 [#allocation2], 4
      %s180 = int_to_ptr.vmem [resolvable:$true] %s179
      %182 = dma.vmem_to_hbm [thread:$0]  %s180, 64, %s5, [#allocation3]
    $region25: #{encoder_cnn_forward.3} parent=1 // pred_fallthru
      _
    // Predicated region
    $region26: #{encoder_cnn_forward.3} parent=1 // pred_check
      _
    $region27: #{encoder_cnn_forward.3} parent=1 // pred_check_branch
      %184 = sbr.rel (0) target = $region29
    $region28: #{encoder_cnn_forward.3} parent=1 // pred_region
      %185 = dma.done [#allocation3], 64
    $region29: #{encoder_cnn_forward.3} parent=1 // pred_fallthru
      _
    %186 = vsyncpa [#allocation3], 1

</llo_original>
